<compile_context>
chip_gen: v5e
topology: v5e:2x2
jax: 0.10.0
libtpu: 0.0.40
codegen_flags: <defaults>
</compile_context>

<pallas_src>
import functools

import jax
import jax.numpy as jnp
from jax.experimental import pallas as pl
from jax.experimental.pallas import tpu as pltpu


def _round_up(n, m):
    return ((n + m - 1) // m) * m


# ------------------------- Pallas kernel -------------------------

def _grn_kernel(xc_ref, wa_ref, w2_ref, wg_ref, consts_ref, o_ref, *, fo_p):
    xc = xc_ref[...]                                   # (TR, FIC_P) compute dtype

    # Fused [skip-residual | fc1(x) + context(c)] matmul (shared LHS), f32 acc.
    h_all = jnp.dot(xc, wa_ref[...], preferred_element_type=jnp.float32)
    h_all = h_all + consts_ref[0:1, : h_all.shape[-1]]      # [bskip | b1+bc]
    residual = h_all[:, :fo_p]                               # (TR, fo_p)
    h = h_all[:, fo_p:]                                      # (TR, fh_p)

    # ELU (alpha = 1.0) in f32. Clamp the unused branch's argument so exp stays
    # cheap/finite; exp(h)-1 is accurate enough in absolute terms near 0.
    h = jnp.where(h > 0.0, h, jnp.exp(jnp.minimum(h, 0.0)) - 1.0)

    # fc2
    y = jnp.dot(h.astype(w2_ref.dtype), w2_ref[...],
                preferred_element_type=jnp.float32)
    y = y + consts_ref[1:2, :fo_p]                           # b2

    # dropout: eval mode -> identity.
    # Fused GLU gate: [sigmoid branch | linear branch] in one matmul.
    g = jnp.dot(y.astype(wg_ref.dtype), wg_ref[...],
                preferred_element_type=jnp.float32)
    g = g + consts_ref[2:3, : 2 * fo_p]                      # [bg1 | bg2]
    y = jax.nn.sigmoid(g[:, :fo_p]) * g[:, fo_p:]

    # Residual add + folded eval-mode BatchNorm: (y + res) * scale + shift.
    y = (y + residual) * consts_ref[3:4, :fo_p] + consts_ref[3:4, fo_p:2 * fo_p]
    o_ref[...] = y.astype(o_ref.dtype)


# ------------------------- Wrapper -------------------------

def grn_forward(x, context, params, *, tile_rows=512, compute_dtype=jnp.bfloat16):
    """x: (B, T, input_size), context: (B, T, context_size) -> (B, T, output_size)."""
    B, T, Fi = x.shape
    R = B * T
    x2 = x.reshape(R, Fi).astype(jnp.float32)
    c2 = context.reshape(R, -1).astype(jnp.float32)
    Fc = c2.shape[-1]
    Fh = params["b1"].shape[-1]
    Fo = params["bskip"].shape[-1]

    # Lane-pad every feature dim to a multiple of 128.
    fic_p = _round_up(Fi + Fc, 128)
    fh_p = _round_up(Fh, 128)
    fo_p = _round_up(Fo, 128)
    cw = max(fo_p + fh_p, 2 * fo_p)

    # Row tiling: big row blocks (multiple of 8); rows zero-padded to the tile.
    tr = _round_up(min(int(tile_rows), _round_up(R, 8)), 8)
    r_pad = _round_up(R, tr)
    n_blocks = r_pad // tr

    # Activations: [x | c] concatenated, zero-padded, compute dtype (bf16 default).
    xc = jnp.zeros((r_pad, fic_p), jnp.float32)
    xc = xc.at[:R, :Fi].set(x2).at[:R, Fi:Fi + Fc].set(c2)
    xc = xc.astype(compute_dtype)

    # Fused first-stage weight: [x|c] @ [[Wskip | W1], [0 | Wc]].
    wa = jnp.zeros((fic_p, fo_p + fh_p), jnp.float32)
    wa = wa.at[:Fi, :Fo].set(params["wskip_t"])
    wa = wa.at[:Fi, fo_p:fo_p + Fh].set(params["w1_t"])
    wa = wa.at[Fi:Fi + Fc, fo_p:fo_p + Fh].set(params["wc_t"])
    wa = wa.astype(compute_dtype)

    w2 = jnp.zeros((fh_p, fo_p), jnp.float32)
    w2 = w2.at[:Fh, :Fo].set(params["w2_t"]).astype(compute_dtype)

    # Fused GLU weight: y @ [Wg1 | Wg2].
    wg = jnp.zeros((fo_p, 2 * fo_p), jnp.float32)
    wg = wg.at[:Fo, :Fo].set(params["wg1_t"])
    wg = wg.at[:Fo, fo_p:fo_p + Fo].set(params["wg2_t"])
    wg = wg.astype(compute_dtype)

    # Packed f32 constants: row0=[bskip | b1+bc], row1=[b2 | 0],
    # row2=[bg1 | bg2], row3=[bn_scale | bn_shift]; rows 4..7 sublane padding.
    bn_scale = params["bn_gamma"] * jax.lax.rsqrt(params["bn_var"] + 1e-5)
    bn_shift = params["bn_beta"] - params["bn_mean"] * bn_scale
    consts = jnp.zeros((8, cw), jnp.float32)
    consts = consts.at[0, :Fo].set(params["bskip"][0])
    consts = consts.at[0, fo_p:fo_p + Fh].set(params["b1"][0] + params["bc"][0])
    consts = consts.at[1, :Fo].set(params["b2"][0])
    consts = consts.at[2, :Fo].set(params["bg1"][0])
    consts = consts.at[2, fo_p:fo_p + Fo].set(params["bg2"][0])
    consts = consts.at[3, :Fo].set(bn_scale[0])
    consts = consts.at[3, fo_p:fo_p + Fo].set(bn_shift[0])

    kernel = functools.partial(_grn_kernel, fo_p=fo_p)

    out = pl.pallas_call(
        kernel,
        out_shape=jax.ShapeDtypeStruct((r_pad, fo_p), jnp.float32),
        grid=(n_blocks,),
        in_specs=[
            pl.BlockSpec((tr, fic_p), lambda i: (i, 0)),
            pl.BlockSpec(wa.shape, lambda i: (0, 0)),
            pl.BlockSpec(w2.shape, lambda i: (0, 0)),
            pl.BlockSpec(wg.shape, lambda i: (0, 0)),
            pl.BlockSpec(consts.shape, lambda i: (0, 0)),
        ],
        out_specs=pl.BlockSpec((tr, fo_p), lambda i: (i, 0)),
        compiler_params=pltpu.CompilerParams(
            dimension_semantics=("parallel",),
        ),
    )(xc, wa, w2, wg, consts)

    return out[:R, :Fo].reshape(B, T, Fo)


# ------------------------- Pure-JAX reference -------------------------

def grn_reference(x, context, params, compute_dtype=jnp.float32):
    """Reference GRN. compute_dtype mirrors the kernel's MXU input dtype."""
    B, T, Fi = x.shape
    x2 = x.reshape(-1, Fi).astype(jnp.float32)
    c2 = context.reshape(x2.shape[0], -1).astype(jnp.float32)

    def mm(a, w):
        return jnp.dot(a.astype(compute_dtype), w.astype(compute_dtype),
                       preferred_element_type=jnp.float32)

    residual = mm(x2, params["wskip_t"]) + params["bskip"]
    h = mm(x2, params["w1_t"]) + mm(c2, params["wc_t"]) \
        + (params["b1"] + params["bc"])
    h = jnp.where(h > 0.0, h, jnp.exp(jnp.minimum(h, 0.0)) - 1.0)
    y = mm(h, params["w2_t"]) + params["b2"]
    sig = jax.nn.sigmoid(mm(y, params["wg1_t"]) + params["bg1"])
    lin = mm(y, params["wg2_t"]) + params["bg2"]
    y = sig * lin + residual
    scale = params["bn_gamma"] * jax.lax.rsqrt(params["bn_var"] + 1e-5)
    shift = params["bn_beta"] - params["bn_mean"] * scale
    y = y * scale + shift
    return y.reshape(B, T, -1)


# ------------------------- Parameter init -------------------------

def init_params(key, input_size, hidden_size, output_size, context_size):
    ks = jax.random.split(key, 12)

    def linear(kw, kb, fan_in, fan_out):
        bound = 1.0 / jnp.sqrt(fan_in)
        # PyTorch nn.Linear stores (out, in); keep transposed (in, out) here.
        w_t = jax.random.uniform(kw, (fan_in, fan_out), jnp.float32, -bound, bound)
        b = jax.random.uniform(kb, (1, fan_out), jnp.float32, -bound, bound)
        return w_t, b

    wskip_t, bskip = linear(ks[0], ks[1], input_size, output_size)
    w1_t, b1 = linear(ks[2], ks[3], input_size, hidden_size)
    wc_t, bc = linear(ks[4], ks[5], context_size, hidden_size)
    w2_t, b2 = linear(ks[6], ks[7], hidden_size, output_size)
    wg1_t, bg1 = linear(ks[8], ks[9], output_size, output_size)
    wg2_t, bg2 = linear(ks[10], ks[11], output_size, output_size)

    # BatchNorm1d eval-mode stats / affine (deterministic, non-trivial values).
    idx = jnp.arange(output_size, dtype=jnp.float32)
    bn_gamma = (1.0 + 0.05 * idx).reshape(1, output_size)
    bn_beta = (0.01 * idx).reshape(1, output_size)
    bn_mean = (0.02 * idx - 0.05).reshape(1, output_size)
    bn_var = (1.0 + 0.1 * idx).reshape(1, output_size)

    return dict(
        wskip_t=wskip_t, bskip=bskip,
        w1_t=w1_t, b1=b1,
        wc_t=wc_t, bc=bc,
        w2_t=w2_t, b2=b2,
        wg1_t=wg1_t, bg1=bg1,
        wg2_t=wg2_t, bg2=bg2,
        bn_gamma=bn_gamma, bn_beta=bn_beta, bn_mean=bn_mean, bn_var=bn_var,
    )


# ------------------------- Main -------------------------

if __name__ == "__main__":
    B, T = 2, 8
    input_size, hidden_size, output_size, context_size = 16, 32, 8, 12

    key = jax.random.PRNGKey(0)
    kx, kc, kp = jax.random.split(key, 3)

    x = jax.random.normal(kx, (B, T, input_size), dtype=jnp.float32)
    context = jax.random.normal(kc, (B, T, context_size), dtype=jnp.float32)
    params = init_params(kp, input_size, hidden_size, output_size, context_size)

    out = grn_forward(x, context, params)
    out = jax.block_until_ready(out)
    assert out.shape == (B, T, output_size)

    # Precision-matched check (same bf16 MXU inputs as the kernel) verifies the
    # fused/padded plumbing tightly; the f32 reference check verifies semantics.
    ref_bf16 = grn_reference(x, context, params, compute_dtype=jnp.bfloat16)
    ref_f32 = grn_reference(x, context, params, compute_dtype=jnp.float32)
    assert jnp.allclose(out, ref_bf16, rtol=5e-3, atol=5e-3), \
        "mismatch vs precision-matched reference"
    assert jnp.allclose(out, ref_f32, rtol=8e-2, atol=8e-2), \
        "mismatch vs f32 reference"

    print("KERNEL_OK")
</pallas_src>

<mosaic_0001>
module attributes {stable_mosaic.version = 11 : i64} {
  func.func @_grn_kernel(%arg0: i32, %arg1: memref<16x128xbf16, #tpu.memory_space<vmem>>, %arg2: memref<128x256xbf16, #tpu.memory_space<vmem>>, %arg3: memref<128x128xbf16, #tpu.memory_space<vmem>>, %arg4: memref<128x256xbf16, #tpu.memory_space<vmem>>, %arg5: memref<8x256xf32, #tpu.memory_space<vmem>>, %arg6: memref<16x128xf32, #tpu.memory_space<vmem>>) attributes {dimension_semantics = [#tpu.dimension_semantics<parallel>], iteration_bounds = array<i64: 1>, scalar_prefetch = 0 : i64, scratch_operands = 0 : i64, tpu.core_type = #tpu.core_type<tc>, window_params = [{transform_indices = @transform_0, window_bounds = array<i64: 16, 128>}, {pipeline_mode = #tpu.pipeline_mode<synchronous>, transform_indices = @transform_1, window_bounds = array<i64: 128, 256>}, {pipeline_mode = #tpu.pipeline_mode<synchronous>, transform_indices = @transform_2, window_bounds = array<i64: 128, 128>}, {pipeline_mode = #tpu.pipeline_mode<synchronous>, transform_indices = @transform_3, window_bounds = array<i64: 128, 256>}, {pipeline_mode = #tpu.pipeline_mode<synchronous>, transform_indices = @transform_4, window_bounds = array<i64: 8, 256>}, {transform_indices = @transform_5, window_bounds = array<i64: 16, 128>}]} {
    %c0 = arith.constant 0 : index
    %c0_0 = arith.constant 0 : index
    %0 = vector.load %arg1[%c0, %c0_0] : memref<16x128xbf16, #tpu.memory_space<vmem>>, vector<16x128xbf16>
    %c0_1 = arith.constant 0 : index
    %c0_2 = arith.constant 0 : index
    %1 = vector.load %arg2[%c0_1, %c0_2] : memref<128x256xbf16, #tpu.memory_space<vmem>>, vector<128x256xbf16>
    %cst = arith.constant dense<0.000000e+00> : vector<16x256xf32>
    %2 = tpu.matmul %0, %1, %cst {dimension_numbers = #tpu.dot_dimension_numbers<[1], [0], [0], [1], [0, 0, 1, 1], [], []>} : vector<16x128xbf16>, vector<128x256xbf16>, vector<16x256xf32> -> vector<16x256xf32>
    %c0_3 = arith.constant 0 : index
    %c0_4 = arith.constant 0 : index
    %3 = vector.load %arg5[%c0_3, %c0_4] : memref<8x256xf32, #tpu.memory_space<vmem>>, vector<1x256xf32>
    %4 = vector.broadcast %3 : vector<1x256xf32> to vector<16x256xf32>
    %5 = arith.addf %2, %4 : vector<16x256xf32>
    %6 = vector.extract_strided_slice %5 {offsets = [0, 0], sizes = [16, 128], strides = [1, 1]} : vector<16x256xf32> to vector<16x128xf32>
    %7 = vector.extract_strided_slice %5 {offsets = [0, 128], sizes = [16, 128], strides = [1, 1]} : vector<16x256xf32> to vector<16x128xf32>
    %cst_5 = arith.constant 0.000000e+00 : f32
    %8 = vector.broadcast %cst_5 : f32 to vector<16x128xf32>
    %9 = arith.cmpf ogt, %7, %8 : vector<16x128xf32>
    %cst_6 = arith.constant 0.000000e+00 : f32
    %10 = vector.broadcast %cst_6 : f32 to vector<16x128xf32>
    %11 = arith.minimumf %7, %10 : vector<16x128xf32>
    %12 = math.exp %11 : vector<16x128xf32>
    %cst_7 = arith.constant 1.000000e+00 : f32
    %13 = vector.broadcast %cst_7 : f32 to vector<16x128xf32>
    %14 = arith.subf %12, %13 : vector<16x128xf32>
    %15 = arith.select %9, %7, %14 : vector<16x128xi1>, vector<16x128xf32>
    %16 = arith.truncf %15 : vector<16x128xf32> to vector<16x128xbf16>
    %c0_8 = arith.constant 0 : index
    %c0_9 = arith.constant 0 : index
    %17 = vector.load %arg3[%c0_8, %c0_9] : memref<128x128xbf16, #tpu.memory_space<vmem>>, vector<128x128xbf16>
    %cst_10 = arith.constant dense<0.000000e+00> : vector<16x128xf32>
    %18 = tpu.matmul %16, %17, %cst_10 {dimension_numbers = #tpu.dot_dimension_numbers<[1], [0], [0], [1], [0, 0, 1, 1], [], []>} : vector<16x128xbf16>, vector<128x128xbf16>, vector<16x128xf32> -> vector<16x128xf32>
    %c1 = arith.constant 1 : index
    %c0_11 = arith.constant 0 : index
    %19 = vector.load %arg5[%c1, %c0_11] : memref<8x256xf32, #tpu.memory_space<vmem>>, vector<1x128xf32>
    %20 = vector.broadcast %19 : vector<1x128xf32> to vector<16x128xf32>
    %21 = arith.addf %18, %20 : vector<16x128xf32>
    %22 = arith.truncf %21 : vector<16x128xf32> to vector<16x128xbf16>
    %c0_12 = arith.constant 0 : index
    %c0_13 = arith.constant 0 : index
    %23 = vector.load %arg4[%c0_12, %c0_13] : memref<128x256xbf16, #tpu.memory_space<vmem>>, vector<128x256xbf16>
    %cst_14 = arith.constant dense<0.000000e+00> : vector<16x256xf32>
    %24 = tpu.matmul %22, %23, %cst_14 {dimension_numbers = #tpu.dot_dimension_numbers<[1], [0], [0], [1], [0, 0, 1, 1], [], []>} : vector<16x128xbf16>, vector<128x256xbf16>, vector<16x256xf32> -> vector<16x256xf32>
    %c2 = arith.constant 2 : index
    %c0_15 = arith.constant 0 : index
    %25 = vector.load %arg5[%c2, %c0_15] : memref<8x256xf32, #tpu.memory_space<vmem>>, vector<1x256xf32>
    %26 = vector.broadcast %25 : vector<1x256xf32> to vector<16x256xf32>
    %27 = arith.addf %24, %26 : vector<16x256xf32>
    %28 = vector.extract_strided_slice %27 {offsets = [0, 0], sizes = [16, 128], strides = [1, 1]} : vector<16x256xf32> to vector<16x128xf32>
    %29 = arith.negf %28 : vector<16x128xf32>
    %30 = math.exp %29 : vector<16x128xf32>
    %cst_16 = arith.constant 1.000000e+00 : f32
    %31 = vector.broadcast %cst_16 : f32 to vector<16x128xf32>
    %32 = arith.addf %31, %30 : vector<16x128xf32>
    %33 = arith.divf %31, %32 : vector<16x128xf32>
    %34 = vector.extract_strided_slice %27 {offsets = [0, 128], sizes = [16, 128], strides = [1, 1]} : vector<16x256xf32> to vector<16x128xf32>
    %35 = arith.mulf %33, %34 : vector<16x128xf32>
    %36 = arith.addf %35, %6 : vector<16x128xf32>
    %c3 = arith.constant 3 : index
    %c0_17 = arith.constant 0 : index
    %37 = vector.load %arg5[%c3, %c0_17] : memref<8x256xf32, #tpu.memory_space<vmem>>, vector<1x128xf32>
    %38 = vector.broadcast %37 : vector<1x128xf32> to vector<16x128xf32>
    %39 = arith.mulf %36, %38 : vector<16x128xf32>
    %c3_18 = arith.constant 3 : index
    %c128 = arith.constant 128 : index
    %40 = vector.load %arg5[%c3_18, %c128] : memref<8x256xf32, #tpu.memory_space<vmem>>, vector<1x128xf32>
    %41 = vector.broadcast %40 : vector<1x128xf32> to vector<16x128xf32>
    %42 = arith.addf %39, %41 : vector<16x128xf32>
    %c0_19 = arith.constant 0 : index
    %c0_20 = arith.constant 0 : index
    %43 = vector.load %arg6[%c0_19, %c0_20] : memref<16x128xf32, #tpu.memory_space<vmem>>, vector<16x128xf32>
    tpu.vector_store %arg6[%c0_19, %c0_20], %42 {strides = array<i32>} : memref<16x128xf32, #tpu.memory_space<vmem>>, vector<16x128xf32>,
    return
  }
  func.func @transform_0(%arg0: i32) -> (i32, i32) {
    %c0_i32 = arith.constant 0 : i32
    %c0_i32_0 = arith.constant 0 : i32
    return %arg0, %c0_i32 : i32, i32
  }
  func.func @transform_1(%arg0: i32) -> (i32, i32) {
    %c0_i32 = arith.constant 0 : i32
    %c0_i32_0 = arith.constant 0 : i32
    %c0_i32_1 = arith.constant 0 : i32
    return %c0_i32, %c0_i32_0 : i32, i32
  }
  func.func @transform_2(%arg0: i32) -> (i32, i32) {
    %c0_i32 = arith.constant 0 : i32
    %c0_i32_0 = arith.constant 0 : i32
    %c0_i32_1 = arith.constant 0 : i32
    return %c0_i32, %c0_i32_0 : i32, i32
  }
  func.func @transform_3(%arg0: i32) -> (i32, i32) {
    %c0_i32 = arith.constant 0 : i32
    %c0_i32_0 = arith.constant 0 : i32
    %c0_i32_1 = arith.constant 0 : i32
    return %c0_i32, %c0_i32_0 : i32, i32
  }
  func.func @transform_4(%arg0: i32) -> (i32, i32) {
    %c0_i32 = arith.constant 0 : i32
    %c0_i32_0 = arith.constant 0 : i32
    %c0_i32_1 = arith.constant 0 : i32
    return %c0_i32, %c0_i32_0 : i32, i32
  }
  func.func @transform_5(%arg0: i32) -> (i32, i32) {
    %c0_i32 = arith.constant 0 : i32
    %c0_i32_0 = arith.constant 0 : i32
    return %arg0, %c0_i32 : i32, i32
  }
}

</mosaic_0001>

<llo_original>
// kernel: tpu_custom_call.1
$region0: #{tpu_custom_call.1}
  #allocation0 [shape = 'u32[]', space=smem, size = 0x4, offset = 0x4, fixed_abs, tag = 'smem constant byte address 0x4 - core index']
  #allocation1 [shape = 'u32[72,128]{1,0:T(1,128)}', space=vmem, size = 0x9000, scoped, tag = 'internal scratch']
  %s0 = inlined_call_operand.hbm [shape: bf16[16,128], index: 0, kind: input, shape index: {}]
  %s1 = inlined_call_operand.hbm [shape: bf16[128,256], index: 1, kind: input, shape index: {}]
  %s2 = inlined_call_operand.hbm [shape: bf16[128,128], index: 2, kind: input, shape index: {}]
  %s3 = inlined_call_operand.hbm [shape: bf16[128,256], index: 3, kind: input, shape index: {}]
  %s4 = inlined_call_operand.hbm [shape: f32[8,256], index: 4, kind: input, shape index: {}]
  %s5 = inlined_call_operand.hbm [shape: f32[16,128], index: 5, kind: output, shape index: {}]
  %s6 = sld [smem:[#allocation0]]
  $region50: #{tpu_custom_call.1} parent=0
    _
  %s8 = ssub.s32 1, %s6
  %s9 = scalar_select 0, %s8, %s6
  $region1: #{tpu_custom_call.1} parent=0
    #allocation2 [shape = 'u8[4096]{0}', space=vmem, size = 0x1000, scoped, tag = 'input window, operand 0, single buffered']
    #allocation3 [shape = 's32[1]{0}', space=sflag, size = 0x4, scoped, tag = 'scoped memory for tpu_custom_call.1']
    #allocation4 [shape = 's32[1]{0}', space=sflag, size = 0x4, scoped, tag = 'scoped memory for tpu_custom_call.1']
    #allocation5 [shape = 'u8[65536]{0}', space=vmem, size = 0x10000, scoped, tag = 'input window, operand 1, single buffered']
    #allocation6 [shape = 's32[1]{0}', space=sflag, size = 0x4, scoped, tag = 'scoped memory for tpu_custom_call.1']
    #allocation7 [shape = 'u8[32768]{0}', space=vmem, size = 0x8000, scoped, tag = 'input window, operand 2, single buffered']
    #allocation8 [shape = 'u8[65536]{0}', space=vmem, size = 0x10000, scoped, tag = 'input window, operand 3, single buffered']
    #allocation9 [shape = 's32[1]{0}', space=sflag, size = 0x4, scoped, tag = 'scoped memory for tpu_custom_call.1']
    #allocation10 [shape = 'u8[8192]{0}', space=vmem, size = 0x2000, scoped, tag = 'input window, operand 4, single buffered']
    #allocation11 [shape = 'u8[8192]{0}', space=vmem, size = 0x2000, scoped, tag = 'output window, operand 0, single buffered']
    %10 = vsyncpa [#allocation3], 0
    %11 = vsyncpa [#allocation6], 0
    %12 = vsyncpa [#allocation9], 0
    %13 = vsyncpa [#allocation4], 0
    // Predicated region
    $region2: #{tpu_custom_call.1} parent=1 // pred_check
      _
    $region3: #{tpu_custom_call.1} parent=1 // pred_check_branch
      %15 = sbr.rel (0) target = $region5
    $region4: #{tpu_custom_call.1} parent=1 // pred_region
      %17 = vsyncadd [#allocation3], 0
      %s18 = sshll.u32 %s0, 4
      %s19 = int_to_ptr.hbm [resolvable:$true] %s18
      %s20 = sshll.u32 [#allocation2], 4
      %s21 = int_to_ptr.vmem [resolvable:$true] %s20
      %26 = dma.hbm_to_vmem [thread:$0]  %s19, 128, %s21, [#allocation3], 64, 64, 4
    $region5: #{tpu_custom_call.1} parent=1 // pred_fallthru
      _
    // Predicated region
    $region6: #{tpu_custom_call.1} parent=1 // pred_check
      _
    $region7: #{tpu_custom_call.1} parent=1 // pred_check_branch
      %28 = sbr.rel (0) target = $region9
    $region8: #{tpu_custom_call.1} parent=1 // pred_region
      %30 = vsyncadd [#allocation6], 0
      %s31 = sshll.u32 %s1, 4
      %s32 = int_to_ptr.hbm [resolvable:$true] %s31
      %s33 = sshll.u32 [#allocation5], 4
      %s34 = int_to_ptr.vmem [resolvable:$true] %s33
      %39 = dma.hbm_to_vmem [thread:$0]  %s32, 2048, %s34, [#allocation6], 128, 128, 8
    $region9: #{tpu_custom_call.1} parent=1 // pred_fallthru
      _
    // Predicated region
    $region10: #{tpu_custom_call.1} parent=1 // pred_check
      _
    $region11: #{tpu_custom_call.1} parent=1 // pred_check_branch
      %41 = sbr.rel (0) target = $region13
    $region12: #{tpu_custom_call.1} parent=1 // pred_region
      %43 = vsyncadd [#allocation6], 0
      %s44 = sshll.u32 %s2, 4
      %s45 = int_to_ptr.hbm [resolvable:$true] %s44
      %s46 = sshll.u32 [#allocation7], 4
      %s47 = int_to_ptr.vmem [resolvable:$true] %s46
      %52 = dma.hbm_to_vmem [thread:$0]  %s45, 1024, %s47, [#allocation6], 64, 64, 4
    $region13: #{tpu_custom_call.1} parent=1 // pred_fallthru
      _
    // Predicated region
    $region14: #{tpu_custom_call.1} parent=1 // pred_check
      _
    $region15: #{tpu_custom_call.1} parent=1 // pred_check_branch
      %54 = sbr.rel (0) target = $region17
    $region16: #{tpu_custom_call.1} parent=1 // pred_region
      %56 = vsyncadd [#allocation9], 0
      %s57 = sshll.u32 %s3, 4
      %s58 = int_to_ptr.hbm [resolvable:$true] %s57
      %s59 = sshll.u32 [#allocation8], 4
      %s60 = int_to_ptr.vmem [resolvable:$true] %s59
      %65 = dma.hbm_to_vmem [thread:$0]  %s58, 2048, %s60, [#allocation9], 128, 128, 8
    $region17: #{tpu_custom_call.1} parent=1 // pred_fallthru
      _
    // Predicated region
    $region18: #{tpu_custom_call.1} parent=1 // pred_check
      _
    $region19: #{tpu_custom_call.1} parent=1 // pred_check_branch
      %67 = sbr.rel (0) target = $region21
    $region20: #{tpu_custom_call.1} parent=1 // pred_region
      %69 = vsyncadd [#allocation9], 0
      %s71 = sshll.u32 %s4, 4
      %s72 = int_to_ptr.hbm [resolvable:$true] %s71
      %s73 = sshll.u32 [#allocation10], 4
      %s74 = int_to_ptr.vmem [resolvable:$true] %s73
      %76 = dma.hbm_to_vmem [thread:$0]  %s72, 256, %s74, [#allocation9]
    $region21: #{tpu_custom_call.1} parent=1 // pred_fallthru
      _
    // Predicated region
    $region22: #{tpu_custom_call.1} parent=1 // pred_check
      _
    $region23: #{tpu_custom_call.1} parent=1 // pred_check_branch
      %78 = sbr.rel (0) target = $region25
    $region24: #{tpu_custom_call.1} parent=1 // pred_region
      %80 = dma.done [#allocation3], 128
    $region25: #{tpu_custom_call.1} parent=1 // pred_fallthru
      _
    // Predicated region
    $region26: #{tpu_custom_call.1} parent=1 // pred_check
      _
    $region27: #{tpu_custom_call.1} parent=1 // pred_check_branch
      %82 = sbr.rel (0) target = $region29
    $region28: #{tpu_custom_call.1} parent=1 // pred_region
      %84 = dma.done [#allocation6], 2048
    $region29: #{tpu_custom_call.1} parent=1 // pred_fallthru
      _
    // Predicated region
    $region30: #{tpu_custom_call.1} parent=1 // pred_check
      _
    $region31: #{tpu_custom_call.1} parent=1 // pred_check_branch
      %86 = sbr.rel (0) target = $region33
    $region32: #{tpu_custom_call.1} parent=1 // pred_region
      %88 = dma.done [#allocation6], 1024
    $region33: #{tpu_custom_call.1} parent=1 // pred_fallthru
      _
    // Predicated region
    $region34: #{tpu_custom_call.1} parent=1 // pred_check
      _
    $region35: #{tpu_custom_call.1} parent=1 // pred_check_branch
      %90 = sbr.rel (0) target = $region37
    $region36: #{tpu_custom_call.1} parent=1 // pred_region
      %92 = dma.done [#allocation9], 2048
    $region37: #{tpu_custom_call.1} parent=1 // pred_fallthru
      _
    // Predicated region
    $region38: #{tpu_custom_call.1} parent=1 // pred_check
      _
    $region39: #{tpu_custom_call.1} parent=1 // pred_check_branch
      %94 = sbr.rel (0) target = $region41
    $region40: #{tpu_custom_call.1} parent=1 // pred_region
      %96 = dma.done [#allocation9], 256
    $region41: #{tpu_custom_call.1} parent=1 // pred_fallthru
      _
    %v97 = vld [vmem:[#allocation2] sm:$0xf]
    %v98 = vld [vmem:[#allocation2 + $0x4] sm:$0xf]
    %v99 = vld [vmem:[#allocation5] sm:$0xff]
    %v100 = vld [vmem:[#allocation5 + $0x8] sm:$0xff]
    %v101 = vld [vmem:[#allocation5 + $0x10] sm:$0xff]
    %v102 = vld [vmem:[#allocation5 + $0x18] sm:$0xff]
    %v103 = vld [vmem:[#allocation5 + $0x20] sm:$0xff]
    %v104 = vld [vmem:[#allocation5 + $0x28] sm:$0xff]
    %v105 = vld [vmem:[#allocation5 + $0x30] sm:$0xff]
    %v106 = vld [vmem:[#allocation5 + $0x38] sm:$0xff]
    %v107 = vld [vmem:[#allocation5 + $0x40] sm:$0xff]
    %v108 = vld [vmem:[#allocation5 + $0x48] sm:$0xff]
    %v109 = vld [vmem:[#allocation5 + $0x50] sm:$0xff]
    %v110 = vld [vmem:[#allocation5 + $0x58] sm:$0xff]
    %v111 = vld [vmem:[#allocation5 + $0x60] sm:$0xff]
    %v112 = vld [vmem:[#allocation5 + $0x68] sm:$0xff]
    %v113 = vld [vmem:[#allocation5 + $0x70] sm:$0xff]
    %v114 = vld [vmem:[#allocation5 + $0x78] sm:$0xff]
    %v115 = vld [vmem:[#allocation10] ss:$8 sm:$0x3]
    %v117 = vperm.slane %v115, 0
    %v118 = vperm.slane %v115, 1
    %v123 = vunpack.c.l.b16 %v97
    %v124 = vunpack.c.l.b16 %v98
    %v125 = vpack.c.b16 %v124, %v123
    %v143 = vunpack.c.l.b16 %v99
    %v144 = vunpack.c.h.b16 %v99
    %v145 = vunpack.c.l.b16 %v100
    %v146 = vunpack.c.h.b16 %v100
    %v147 = vunpack.c.l.b16 %v101
    %v148 = vunpack.c.h.b16 %v101
    %v149 = vunpack.c.l.b16 %v102
    %v150 = vunpack.c.h.b16 %v102
    %v151 = vunpack.c.l.b16 %v103
    %v152 = vunpack.c.h.b16 %v103
    %v153 = vunpack.c.l.b16 %v104
    %v154 = vunpack.c.h.b16 %v104
    %v155 = vunpack.c.l.b16 %v105
    %v156 = vunpack.c.h.b16 %v105
    %v157 = vunpack.c.l.b16 %v106
    %v158 = vunpack.c.h.b16 %v106
    %v159 = vunpack.c.l.b16 %v107
    %v160 = vunpack.c.h.b16 %v107
    %v161 = vunpack.c.l.b16 %v108
    %v162 = vunpack.c.h.b16 %v108
    %v163 = vunpack.c.l.b16 %v109
    %v164 = vunpack.c.h.b16 %v109
    %v165 = vunpack.c.l.b16 %v110
    %v166 = vunpack.c.h.b16 %v110
    %v167 = vunpack.c.l.b16 %v111
    %v168 = vunpack.c.h.b16 %v111
    %v169 = vunpack.c.l.b16 %v112
    %v170 = vunpack.c.h.b16 %v112
    %v171 = vunpack.c.l.b16 %v113
    %v172 = vunpack.c.h.b16 %v113
    %v173 = vunpack.c.l.b16 %v114
    %v174 = vunpack.c.h.b16 %v114
    %v175 = vpack.c.b16 %v145, %v143
    %v176 = vpack.c.b16 %v146, %v144
    %v177 = vpack.c.b16 %v149, %v147
    %v178 = vpack.c.b16 %v150, %v148
    %v179 = vpack.c.b16 %v153, %v151
    %v180 = vpack.c.b16 %v154, %v152
    %v181 = vpack.c.b16 %v157, %v155
    %v182 = vpack.c.b16 %v158, %v156
    %v183 = vpack.c.b16 %v161, %v159
    %v184 = vpack.c.b16 %v162, %v160
    %v185 = vpack.c.b16 %v165, %v163
    %v186 = vpack.c.b16 %v166, %v164
    %v187 = vpack.c.b16 %v169, %v167
    %v188 = vpack.c.b16 %v170, %v168
    %v189 = vpack.c.b16 %v173, %v171
    %v190 = vpack.c.b16 %v174, %v172
    %207 = vmatpush.bf16.msra.mxu0 %v189
    %208 = vmatpush.bf16.msra.mxu0 %v187
    %209 = vmatpush.bf16.msra.mxu0 %v185
    %210 = vmatpush.bf16.msra.mxu0 %v183
    %211 = vmatpush.bf16.msra.mxu0 %v181
    %212 = vmatpush.bf16.msra.mxu0 %v179
    %213 = vmatpush.bf16.msra.mxu0 %v177
    %214 = vmatpush.bf16.msra.mxu0 %v175
    %215 = vmatmul.bf16.gmra.mxu0 %v125
    %v216 = vpop.f32.mrf.mxu0
    %v217 = vadd.f32 %v117, %v216
    %v218 = vpop.f32.mrf.mxu0
    %v219 = vadd.f32 %v117, %v218
    %220 = vdwg.mxu0
    %221 = vmatpush.bf16.msra.mxu0 %v190
    %222 = vmatpush.bf16.msra.mxu0 %v188
    %223 = vmatpush.bf16.msra.mxu0 %v186
    %224 = vmatpush.bf16.msra.mxu0 %v184
    %225 = vmatpush.bf16.msra.mxu0 %v182
    %226 = vmatpush.bf16.msra.mxu0 %v180
    %227 = vmatpush.bf16.msra.mxu0 %v178
    %228 = vmatpush.bf16.msra.mxu0 %v176
    %229 = vmatmul.bf16.gmra.mxu0 %v125
    %v230 = vpop.f32.mrf.mxu0
    %v231 = vadd.f32 %v118, %v230
    %v232 = vpop.f32.mrf.mxu0
    %v233 = vadd.f32 %v118, %v232
    %234 = vdwg.mxu0
    %vm235 = vcmp.gt.f32.partialorder %v231, 0.0
    %vm236 = vcmp.gt.f32.partialorder %v233, 0.0
    %v237 = vmin.f32 %v231, 0.0
    %v238 = vmin.f32 %v233, 0.0
    %v239 = vmul.f32 %v237, 1.442695
    %v240 = vpow.pop %v239
    %v241 = vmul.f32 %v238, 1.442695
    %v242 = vpow.pop %v241
    %v243 = vsub.f32 %v240, 1.0
    %v244 = vsub.f32 %v242, 1.0
    %v245 = vsel %vm235, %v231, %v243
    %v246 = vsel %vm236, %v233, %v244
    %v247 = vpack.c.bf16 %v246, %v245
    %v248 = vld [vmem:[#allocation7] sm:$0xf]
    %v249 = vld [vmem:[#allocation7 + $0x4] sm:$0xf]
    %v250 = vld [vmem:[#allocation7 + $0x8] sm:$0xf]
    %v251 = vld [vmem:[#allocation7 + $0xc] sm:$0xf]
    %v252 = vld [vmem:[#allocation7 + $0x10] sm:$0xf]
    %v253 = vld [vmem:[#allocation7 + $0x14] sm:$0xf]
    %v254 = vld [vmem:[#allocation7 + $0x18] sm:$0xf]
    %v255 = vld [vmem:[#allocation7 + $0x1c] sm:$0xf]
    %v256 = vld [vmem:[#allocation7 + $0x20] sm:$0xf]
    %v257 = vld [vmem:[#allocation7 + $0x24] sm:$0xf]
    %v258 = vld [vmem:[#allocation7 + $0x28] sm:$0xf]
    %v259 = vld [vmem:[#allocation7 + $0x2c] sm:$0xf]
    %v260 = vld [vmem:[#allocation7 + $0x30] sm:$0xf]
    %v261 = vld [vmem:[#allocation7 + $0x34] sm:$0xf]
    %v262 = vld [vmem:[#allocation7 + $0x38] sm:$0xf]
    %v263 = vld [vmem:[#allocation7 + $0x3c] sm:$0xf]
    %v264 = vld [vmem:[#allocation10 + $0x1] ss:$0 sm:$0xff]
    %v281 = vunpack.c.l.b16 %v248
    %v282 = vunpack.c.l.b16 %v249
    %v283 = vunpack.c.l.b16 %v250
    %v284 = vunpack.c.l.b16 %v251
    %v285 = vunpack.c.l.b16 %v252
    %v286 = vunpack.c.l.b16 %v253
    %v287 = vunpack.c.l.b16 %v254
    %v288 = vunpack.c.l.b16 %v255
    %v289 = vunpack.c.l.b16 %v256
    %v290 = vunpack.c.l.b16 %v257
    %v291 = vunpack.c.l.b16 %v258
    %v292 = vunpack.c.l.b16 %v259
    %v293 = vunpack.c.l.b16 %v260
    %v294 = vunpack.c.l.b16 %v261
    %v295 = vunpack.c.l.b16 %v262
    %v296 = vunpack.c.l.b16 %v263
    %v297 = vpack.c.b16 %v282, %v281
    %v298 = vpack.c.b16 %v284, %v283
    %v299 = vpack.c.b16 %v286, %v285
    %v300 = vpack.c.b16 %v288, %v287
    %v301 = vpack.c.b16 %v290, %v289
    %v302 = vpack.c.b16 %v292, %v291
    %v303 = vpack.c.b16 %v294, %v293
    %v304 = vpack.c.b16 %v296, %v295
    %313 = vmatpush.bf16.msra.mxu0 %v304
    %314 = vmatpush.bf16.msra.mxu0 %v303
    %315 = vmatpush.bf16.msra.mxu0 %v302
    %316 = vmatpush.bf16.msra.mxu0 %v301
    %317 = vmatpush.bf16.msra.mxu0 %v300
    %318 = vmatpush.bf16.msra.mxu0 %v299
    %319 = vmatpush.bf16.msra.mxu0 %v298
    %320 = vmatpush.bf16.msra.mxu0 %v297
    %321 = vmatmul.bf16.gmra.mxu0 %v247
    %v322 = vpop.f32.mrf.mxu0
    %v323 = vadd.f32 %v264, %v322
    %v324 = vpop.f32.mrf.mxu0
    %v325 = vadd.f32 %v264, %v324
    %326 = vdwg.mxu0
    %v327 = vpack.c.bf16 %v325, %v323
    %v328 = vld [vmem:[#allocation8] sm:$0xff]
    %v329 = vld [vmem:[#allocation8 + $0x8] sm:$0xff]
    %v330 = vld [vmem:[#allocation8 + $0x10] sm:$0xff]
    %v331 = vld [vmem:[#allocation8 + $0x18] sm:$0xff]
    %v332 = vld [vmem:[#allocation8 + $0x20] sm:$0xff]
    %v333 = vld [vmem:[#allocation8 + $0x28] sm:$0xff]
    %v334 = vld [vmem:[#allocation8 + $0x30] sm:$0xff]
    %v335 = vld [vmem:[#allocation8 + $0x38] sm:$0xff]
    %v336 = vld [vmem:[#allocation8 + $0x40] sm:$0xff]
    %v337 = vld [vmem:[#allocation8 + $0x48] sm:$0xff]
    %v338 = vld [vmem:[#allocation8 + $0x50] sm:$0xff]
    %v339 = vld [vmem:[#allocation8 + $0x58] sm:$0xff]
    %v340 = vld [vmem:[#allocation8 + $0x60] sm:$0xff]
    %v341 = vld [vmem:[#allocation8 + $0x68] sm:$0xff]
    %v342 = vld [vmem:[#allocation8 + $0x70] sm:$0xff]
    %v343 = vld [vmem:[#allocation8 + $0x78] sm:$0xff]
    %s344 = scalar_lea.vmem [#allocation10], 2
    %v345 = vld [vmem:[%s344] ss:$8 sm:$0x3]
    %v347 = vperm.slane %v345, 0
    %v348 = vperm.slane %v345, 1
    %v367 = vunpack.c.l.b16 %v328
    %v368 = vunpack.c.h.b16 %v328
    %v369 = vunpack.c.l.b16 %v329
    %v370 = vunpack.c.h.b16 %v329
    %v371 = vunpack.c.l.b16 %v330
    %v372 = vunpack.c.h.b16 %v330
    %v373 = vunpack.c.l.b16 %v331
    %v374 = vunpack.c.h.b16 %v331
    %v375 = vunpack.c.l.b16 %v332
    %v376 = vunpack.c.h.b16 %v332
    %v377 = vunpack.c.l.b16 %v333
    %v378 = vunpack.c.h.b16 %v333
    %v379 = vunpack.c.l.b16 %v334
    %v380 = vunpack.c.h.b16 %v334
    %v381 = vunpack.c.l.b16 %v335
    %v382 = vunpack.c.h.b16 %v335
    %v383 = vunpack.c.l.b16 %v336
    %v384 = vunpack.c.h.b16 %v336
    %v385 = vunpack.c.l.b16 %v337
    %v386 = vunpack.c.h.b16 %v337
    %v387 = vunpack.c.l.b16 %v338
    %v388 = vunpack.c.h.b16 %v338
    %v389 = vunpack.c.l.b16 %v339
    %v390 = vunpack.c.h.b16 %v339
    %v391 = vunpack.c.l.b16 %v340
    %v392 = vunpack.c.h.b16 %v340
    %v393 = vunpack.c.l.b16 %v341
    %v394 = vunpack.c.h.b16 %v341
    %v395 = vunpack.c.l.b16 %v342
    %v396 = vunpack.c.h.b16 %v342
    %v397 = vunpack.c.l.b16 %v343
    %v398 = vunpack.c.h.b16 %v343
    %v399 = vpack.c.b16 %v369, %v367
    %v400 = vpack.c.b16 %v370, %v368
    %v401 = vpack.c.b16 %v373, %v371
    %v402 = vpack.c.b16 %v374, %v372
    %v403 = vpack.c.b16 %v377, %v375
    %v404 = vpack.c.b16 %v378, %v376
    %v405 = vpack.c.b16 %v381, %v379
    %v406 = vpack.c.b16 %v382, %v380
    %v407 = vpack.c.b16 %v385, %v383
    %v408 = vpack.c.b16 %v386, %v384
    %v409 = vpack.c.b16 %v389, %v387
    %v410 = vpack.c.b16 %v390, %v388
    %v411 = vpack.c.b16 %v393, %v391
    %v412 = vpack.c.b16 %v394, %v392
    %v413 = vpack.c.b16 %v397, %v395
    %v414 = vpack.c.b16 %v398, %v396
    %431 = vmatpush.bf16.msra.mxu0 %v413
    %432 = vmatpush.bf16.msra.mxu0 %v411
    %433 = vmatpush.bf16.msra.mxu0 %v409
    %434 = vmatpush.bf16.msra.mxu0 %v407
    %435 = vmatpush.bf16.msra.mxu0 %v405
    %436 = vmatpush.bf16.msra.mxu0 %v403
    %437 = vmatpush.bf16.msra.mxu0 %v401
    %438 = vmatpush.bf16.msra.mxu0 %v399
    %439 = vmatmul.bf16.gmra.mxu0 %v327
    %v440 = vpop.f32.mrf.mxu0
    %v441 = vadd.f32 %v347, %v440
    %v442 = vpop.f32.mrf.mxu0
    %v443 = vadd.f32 %v347, %v442
    %444 = vdwg.mxu0
    %445 = vmatpush.bf16.msra.mxu0 %v414
    %446 = vmatpush.bf16.msra.mxu0 %v412
    %447 = vmatpush.bf16.msra.mxu0 %v410
    %448 = vmatpush.bf16.msra.mxu0 %v408
    %449 = vmatpush.bf16.msra.mxu0 %v406
    %450 = vmatpush.bf16.msra.mxu0 %v404
    %451 = vmatpush.bf16.msra.mxu0 %v402
    %452 = vmatpush.bf16.msra.mxu0 %v400
    %453 = vmatmul.bf16.gmra.mxu0 %v327
    %v454 = vpop.f32.mrf.mxu0
    %v455 = vadd.f32 %v348, %v454
    %v456 = vpop.f32.mrf.mxu0
    %v457 = vadd.f32 %v348, %v456
    %458 = vdwg.mxu0
    %v459 = vxor.u32 %v441, 2147483648
    %v460 = vxor.u32 %v443, 2147483648
    %v461 = vmul.f32 %v459, 1.442695
    %v462 = vpow.pop %v461
    %v463 = vmul.f32 %v460, 1.442695
    %v464 = vpow.pop %v463
    %v465 = vadd.f32 %v462, 1.0
    %v466 = vadd.f32 %v464, 1.0
    %v467 = vrcp.pop %v465
    %v468 = vmul.f32 %v465, %v467
    %v469 = vsub.f32 1.0, %v468
    %v470 = vmul.f32 %v467, %v469
    %v471 = vadd.f32 %v467, %v470
    %vm472 = vweird.f32 %v465
    %vm473 = vweird.f32 %v467
    %vm474 = vmor %vm472, %vm473
    %v475 = vsel %vm474, %v467, %v471
    %v476 = vand.u32 2147483647, %v465
    %vm477 = vcmp.eq.f32.partialorder %v476, 8.507059e+37
    %v478 = vand.u32 %v465, 2147483648
    %v479 = vor.u32 1.1754944e-38, %v478
    %v480 = vsel %vm477, %v479, %v475
    %v481 = vmul.f32 1.0, %v480
    %v482 = vrcp.pop %v466
    %v483 = vmul.f32 %v466, %v482
    %v484 = vsub.f32 1.0, %v483
    %v485 = vmul.f32 %v482, %v484
    %v486 = vadd.f32 %v482, %v485
    %vm487 = vweird.f32 %v466
    %vm488 = vweird.f32 %v482
    %vm489 = vmor %vm487, %vm488
    %v490 = vsel %vm489, %v482, %v486
    %v491 = vand.u32 2147483647, %v466
    %vm492 = vcmp.eq.f32.partialorder %v491, 8.507059e+37
    %v493 = vand.u32 %v466, 2147483648
    %v494 = vor.u32 1.1754944e-38, %v493
    %v495 = vsel %vm492, %v494, %v490
    %v496 = vmul.f32 1.0, %v495
    %v497 = vmul.f32 %v481, %v455
    %v498 = vmul.f32 %v496, %v457
    %v499 = vadd.f32 %v497, %v217
    %v500 = vadd.f32 %v498, %v219
    %v501 = vld [vmem:[#allocation10 + $0x3] ss:$0 sm:$0xff]
    %v502 = vmul.f32 %v499, %v501
    %v503 = vmul.f32 %v500, %v501
    %v504 = vld [vmem:[#allocation10 + $0xb] ss:$0 sm:$0xff]
    %v505 = vadd.f32 %v502, %v504
    %v506 = vadd.f32 %v503, %v504
    %507 = vst [vmem:[#allocation11] sm:$0xff] %v505
    %508 = vst [vmem:[#allocation11 + $0x8] sm:$0xff] %v506
    // Predicated region
    $region42: #{tpu_custom_call.1} parent=1 // pred_check
      _
    $region43: #{tpu_custom_call.1} parent=1 // pred_check_branch
      %510 = sbr.rel (0) target = $region45
    $region44: #{tpu_custom_call.1} parent=1 // pred_region
      %512 = vsyncadd [#allocation4], 0
      %s513 = sshll.u32 [#allocation11], 4
      %s514 = int_to_ptr.vmem [resolvable:$true] %s513
      %s515 = sshll.u32 %s5, 4
      %s516 = int_to_ptr.hbm [resolvable:$true] %s515
      %521 = dma.vmem_to_hbm [thread:$0]  %s514, 256, %s516, [#allocation4], 128, 128, 8
    $region45: #{tpu_custom_call.1} parent=1 // pred_fallthru
      _
    // Predicated region
    $region46: #{tpu_custom_call.1} parent=1 // pred_check
      _
    $region47: #{tpu_custom_call.1} parent=1 // pred_check_branch
      %523 = sbr.rel (0) target = $region49
    $region48: #{tpu_custom_call.1} parent=1 // pred_region
      %525 = dma.done [#allocation4], 256
    $region49: #{tpu_custom_call.1} parent=1 // pred_fallthru
      _
    %526 = vsyncpa [#allocation3], 1
    %527 = vsyncpa [#allocation6], 1
    %528 = vsyncpa [#allocation9], 1
    %529 = vsyncpa [#allocation4], 1

</llo_original>
